<compile_context>
chip_gen: v7x
topology: tpu7x:2x2x1
jax: 0.10.0
libtpu: 0.0.40
codegen_flags: <defaults>
</compile_context>

<pallas_src>
import jax
import jax.numpy as jnp
from jax.experimental import pallas as pl
from jax.experimental.pallas import tpu as pltpu


_VMEM_LIMIT_BYTES = 32 * 1024 * 1024   # conservative: fits v7x (64 MiB) and v5e/v6e
_COPY_BLOCK_BYTES = 4 * 1024 * 1024    # per-block target; x4 (in+out, double-buffered)


def _largest_divisor(total, candidates):
    """Largest candidate that evenly divides `total`, else None."""
    for c in candidates:
        if total % c == 0:
            return c
    return None


# ---------------------------------------------------------------------------
# Kernel 1: pointwise (1x1) conv — one MXU dot per tile, lane-dense output.
# ---------------------------------------------------------------------------

def _pointwise_conv_kernel(w_ref, b_ref, x_ref, o_ref):
    # w_ref: VMEM (Cout, Cin) f32; b_ref: VMEM (Cout, 1) f32.
    # x_ref: VMEM (Cin, TM);      o_ref: VMEM (Cout, TM); TM lane-dense (mult of 128).
    acc = jnp.dot(
        w_ref[...],
        x_ref[...].astype(jnp.float32),
        preferred_element_type=jnp.float32,      # keep f32 accumulation numerics
        precision=jax.lax.Precision.HIGHEST,
    )
    # Fused bias add + single unmasked full-tile store.
    o_ref[...] = (acc + b_ref[...]).astype(o_ref.dtype)


def pointwise_conv_nchw(x_nchw, weight, bias):
    """1x1 conv over NCHW input via a Pallas kernel (MXU channel mix).

    x_nchw: (N, Cin, H, W), weight: (Cin, Cout), bias: (Cout,) -> (N, Cout, H, W)
    """
    n, cin, h, w = x_nchw.shape
    cout = weight.shape[1]
    m = h * w
    # Pure reshape (no transpose): channels stay on sublanes, spatial goes on lanes.
    x3d = x_nchw.reshape(n, cin, m)

    tm = _largest_divisor(m, (16384, 8192, 4096, 2048, 1024, 512, 256, 128)) or m
    grid = (n, m // tm)

    w_t = weight.astype(jnp.float32).T          # (Cout, Cin); tiny one-time transpose
    b2d = bias.astype(jnp.float32).reshape(cout, 1)

    out3d = pl.pallas_call(
        _pointwise_conv_kernel,
        out_shape=jax.ShapeDtypeStruct((n, cout, m), x_nchw.dtype),
        grid=grid,
        in_specs=[
            pl.BlockSpec((cout, cin), lambda b, t: (0, 0)),   # weight, resident in VMEM
            pl.BlockSpec((cout, 1), lambda b, t: (0, 0)),     # bias, resident in VMEM
            pl.BlockSpec((None, cin, tm), lambda b, t: (b, 0, t)),
        ],
        out_specs=pl.BlockSpec((None, cout, tm), lambda b, t: (b, 0, t)),
        compiler_params=pltpu.CompilerParams(
            dimension_semantics=("parallel", "parallel"),
            vmem_limit_bytes=_VMEM_LIMIT_BYTES,
        ),
    )(w_t, b2d, x3d)

    return out3d.reshape(n, cout, h, w)


# ---------------------------------------------------------------------------
# Kernel 2: ActivationSampler.forward() — lane-dense tiled identity copy.
# ---------------------------------------------------------------------------

def _copy_kernel(a_ref, o_ref):
    o_ref[...] = a_ref[...]


def _factor_lane_dense(total):
    """Factor `total` as (rows, lanes) with lanes a big multiple of 128.

    Prefers rows % 8 == 0 (full (8,128) vreg tiles).  Accepts rows <= 8 (single small
    block).  Returns None if no 128-multiple lane width divides `total`.
    """
    fallback = None
    for lanes in (8192, 4096, 2048, 1024, 512, 256, 128):
        if total % lanes == 0:
            rows = total // lanes
            if rows % 8 == 0:
                return rows, lanes
            if rows <= 8 and fallback is None:
                fallback = (rows, lanes)
    return fallback


def _pick_row_tile(rows, lanes, itemsize, max_block_bytes=_COPY_BLOCK_BYTES):
    """Largest multiple-of-8 divisor of `rows` whose (tr, lanes) block fits the budget."""
    best = None
    d = 8
    while d <= rows:
        if rows % d == 0 and d * lanes * itemsize <= max_block_bytes:
            best = d
        d *= 2
    return best if best is not None else rows


def _tiled_copy_2d(a2d):
    rows, lanes = a2d.shape
    tr = _pick_row_tile(rows, lanes, a2d.dtype.itemsize)
    return pl.pallas_call(
        _copy_kernel,
        out_shape=jax.ShapeDtypeStruct((rows, lanes), a2d.dtype),
        grid=(rows // tr,),
        in_specs=[pl.BlockSpec((tr, lanes), lambda i: (i, 0))],
        out_specs=pl.BlockSpec((tr, lanes), lambda i: (i, 0)),
        compiler_params=pltpu.CompilerParams(
            dimension_semantics=("parallel",),
            vmem_limit_bytes=_VMEM_LIMIT_BYTES,
        ),
    )(a2d)


def sample_activation(activation):
    """Return a copy of the stored activation via a lane-dense tiled Pallas copy.

    PyTorch's forward returns the very same tensor object; the zero-cost analogue is
    returning `activation` itself (see ActivationSampler(copy=False)).  The Pallas copy
    is kept for when a genuinely distinct buffer is required; it is tiled into ~<=4 MiB
    lane-dense blocks so it runs near HBM bandwidth on v5e/v6e/v7x.
    """
    total = int(activation.size)
    fact = _factor_lane_dense(total)
    if fact is not None:
        rows, lanes = fact
        out2d = _tiled_copy_2d(activation.reshape(rows, lanes))
        return out2d.reshape(activation.shape)

    # Oddly-sized activation: pad to a multiple of 8*1024, copy a tiled (rows, 1024)
    # slab (rows % 8 == 0 guaranteed), then slice back.  Avoids the old single
    # (1, total) VMEM block that could OOM on v7x / v5e scoped limits.
    padded = ((total + 8191) // 8192) * 8192
    flat = jnp.pad(activation.reshape(-1), (0, padded - total))
    out2d = _tiled_copy_2d(flat.reshape(padded // 1024, 1024))
    return out2d.reshape(-1)[:total].reshape(activation.shape)


# ---------------------------------------------------------------------------
# Module analogues (hook machinery is pure-Python glue, as in PyTorch)
# ---------------------------------------------------------------------------

class PointwiseConvModel:
    """Tiny deterministic model to hook (stand-in for the wrapped nn.Module)."""

    def __init__(self, cin, cout):
        self.weight = (
            jnp.arange(cin * cout, dtype=jnp.float32).reshape(cin, cout) / (cin * cout)
            - 0.5
        )
        self.bias = jnp.linspace(-0.1, 0.1, cout, dtype=jnp.float32)
        self._hooks = []

    def register_forward_hook(self, hook):
        self._hooks.append(hook)

    def __call__(self, x):
        out = pointwise_conv_nchw(x, self.weight, self.bias)
        for hook in self._hooks:
            hook(self, (x,), out)
        return out


class ActivationSampler:
    """Generates a hook for sampling a layer activation (Pallas-backed forward)."""

    def __init__(self, model, copy=True):
        self.model_name = model.__class__.__name__
        self.activation = None
        self._copy = copy
        model.register_forward_hook(self.get_hook())

    def get_hook(self):
        def hook(model, input, output):
            self.activation = output
        return hook

    def __call__(self, x=None):
        return self.forward(x)

    def forward(self, x=None):
        # TODO(synk): hook registration / state capture is Python-side state with no
        # Pallas equivalent; only the returned-activation read is a kernel.
        if self.activation is None:
            return None
        if not self._copy:
            # Exact PyTorch semantics: same buffer, zero HBM traffic (the only >2x win).
            return self.activation
        return sample_activation(self.activation)

    def extra_repr(self):
        return f"{self.model_name}"


# ---------------------------------------------------------------------------
# Demo
# ---------------------------------------------------------------------------

if __name__ == "__main__":
    key = jax.random.PRNGKey(0)
    N, CIN, H, W = 2, 4, 16, 16
    COUT = 8

    x = jax.random.normal(key, (N, CIN, H, W), dtype=jnp.float32)

    model = PointwiseConvModel(CIN, COUT)
    sampler = ActivationSampler(model)

    # Run the hooked model; the hook captures its output.
    y = jax.block_until_ready(model(x))

    # Reference for the synthetic conv (full-precision contraction to match the kernel).
    ref = (
        jnp.einsum("nchw,cd->ndhw", x, model.weight,
                   precision=jax.lax.Precision.HIGHEST)
        + model.bias[None, :, None, None]
    )
    assert bool(jnp.allclose(y, ref, atol=1e-5, rtol=1e-5))

    # ActivationSampler.forward() returns the captured activation (via Pallas copy).
    sampled = jax.block_until_ready(sampler(x))

    assert sampled.shape == (N, COUT, H, W)
    assert sampled.dtype == y.dtype
    assert bool(jnp.allclose(sampled, y, atol=1e-5, rtol=1e-5))

    # Zero-copy path (exact PyTorch semantics) also works.
    sampler_nocopy = ActivationSampler(model, copy=False)
    _ = jax.block_until_ready(model(x))
    assert sampler_nocopy() is sampler_nocopy.activation

    print("KERNEL_OK")
</pallas_src>

<mosaic_0001>
module attributes {stable_mosaic.version = 11 : i64} {
  func.func @_pointwise_conv_kernel(%arg0: i32, %arg1: i32, %arg2: memref<8x4xf32, #tpu.memory_space<vmem>>, %arg3: memref<8x1xf32, #tpu.memory_space<vmem>>, %arg4: memref<1x4x256xf32, #tpu.memory_space<vmem>>, %arg5: memref<1x8x256xf32, #tpu.memory_space<vmem>>) attributes {dimension_semantics = [#tpu.dimension_semantics<parallel>, #tpu.dimension_semantics<parallel>], iteration_bounds = array<i64: 2, 1>, scalar_prefetch = 0 : i64, scratch_operands = 0 : i64, tpu.core_type = #tpu.core_type<tc>, window_params = [{pipeline_mode = #tpu.pipeline_mode<synchronous>, transform_indices = @transform_0, window_bounds = array<i64: 8, 4>}, {pipeline_mode = #tpu.pipeline_mode<synchronous>, transform_indices = @transform_1, window_bounds = array<i64: 8, 1>}, {transform_indices = @transform_2, window_bounds = array<i64: 1, 4, 256>}, {transform_indices = @transform_3, window_bounds = array<i64: 1, 8, 256>}]} {
    %c0 = arith.constant 0 : index
    %c0_0 = arith.constant 0 : index
    %0 = vector.load %arg2[%c0, %c0_0] : memref<8x4xf32, #tpu.memory_space<vmem>>, vector<8x4xf32>
    %c0_1 = arith.constant 0 : index
    %c0_2 = arith.constant 0 : index
    %c0_3 = arith.constant 0 : index
    %1 = vector.load %arg4[%c0_1, %c0_2, %c0_3] : memref<1x4x256xf32, #tpu.memory_space<vmem>>, vector<1x4x256xf32>
    %2 = vector.shape_cast %1 : vector<1x4x256xf32> to vector<4x256xf32>
    %cst = arith.constant dense<0.000000e+00> : vector<8x256xf32>
    %3 = tpu.matmul %0, %2, %cst {dimension_numbers = #tpu.dot_dimension_numbers<[1], [0], [0], [1], [0, 0, 1, 1], [], []>, precision = #tpu.contract_precision<fp32>} : vector<8x4xf32>, vector<4x256xf32>, vector<8x256xf32> -> vector<8x256xf32>
    %c0_4 = arith.constant 0 : index
    %c0_5 = arith.constant 0 : index
    %4 = vector.load %arg3[%c0_4, %c0_5] : memref<8x1xf32, #tpu.memory_space<vmem>>, vector<8x1xf32>
    %5 = vector.broadcast %4 : vector<8x1xf32> to vector<8x256xf32>
    %6 = arith.addf %3, %5 : vector<8x256xf32>
    %c0_6 = arith.constant 0 : index
    %c0_7 = arith.constant 0 : index
    %c0_8 = arith.constant 0 : index
    %7 = vector.load %arg5[%c0_6, %c0_7, %c0_8] : memref<1x8x256xf32, #tpu.memory_space<vmem>>, vector<1x8x256xf32>
    %8 = vector.shape_cast %7 : vector<1x8x256xf32> to vector<8x256xf32>
    %9 = vector.shape_cast %6 : vector<8x256xf32> to vector<1x8x256xf32>
    tpu.vector_store %arg5[%c0_6, %c0_7, %c0_8], %9 {strides = array<i32>} : memref<1x8x256xf32, #tpu.memory_space<vmem>>, vector<1x8x256xf32>,
    return
  }
  func.func @transform_0(%arg0: i32, %arg1: i32) -> (i32, i32) {
    %c0_i32 = arith.constant 0 : i32
    %c0_i32_0 = arith.constant 0 : i32
    %c0_i32_1 = arith.constant 0 : i32
    return %c0_i32, %c0_i32_0 : i32, i32
  }
  func.func @transform_1(%arg0: i32, %arg1: i32) -> (i32, i32) {
    %c0_i32 = arith.constant 0 : i32
    %c0_i32_0 = arith.constant 0 : i32
    %c0_i32_1 = arith.constant 0 : i32
    return %c0_i32, %c0_i32_0 : i32, i32
  }
  func.func @transform_2(%arg0: i32, %arg1: i32) -> (i32, i32, i32) {
    %c0_i32 = arith.constant 0 : i32
    %c0_i32_0 = arith.constant 0 : i32
    return %arg0, %c0_i32, %arg1 : i32, i32, i32
  }
  func.func @transform_3(%arg0: i32, %arg1: i32) -> (i32, i32, i32) {
    %c0_i32 = arith.constant 0 : i32
    %c0_i32_0 = arith.constant 0 : i32
    return %arg0, %c0_i32, %arg1 : i32, i32, i32
  }
}

</mosaic_0001>

<llo_original>
// kernel: tpu_custom_call.1
$region0: #{tpu_custom_call.1}
  #allocation0 [shape = 'u32[]', space=smem, size = 0x4, offset = 0x4, fixed_abs, tag = 'smem constant byte address 0x4 - core index']
  #allocation1 [shape = 'u32[144,128]{1,0:T(1,128)}', space=vmem, size = 0x12000, scoped, tag = 'internal scratch']
  %s0 = inlined_call_operand.vmem [shape: f32[8,4], index: 0, kind: input, shape index: {}]
  %s1 = inlined_call_operand.vmem [shape: f32[8,1], index: 1, kind: input, shape index: {}]
  %s2 = inlined_call_operand.vmem [shape: f32[2,4,256], index: 2, kind: input, shape index: {}]
  %s3 = inlined_call_operand.hbm [shape: f32[2,8,256], index: 3, kind: output, shape index: {}]
  %s4 = sld [smem:[#allocation0]]
  $region45: #{tpu_custom_call.1} parent=0
    _
  %s6 = ssub.s32 1, %s4
  %s7 = scalar_select 0, %s6, %s4
  $region1: #{tpu_custom_call.1} parent=0
    #allocation2 [shape = 'u8[16384]{0}', space=vmem, size = 0x4000, scoped, tag = 'output window, operand 0']
    #allocation3 [shape = 's32[2]{0}', space=sflag, size = 0x8, scoped, tag = 'scoped memory for tpu_custom_call.1']
    %8 = vsyncpa [#allocation3], 0
    %s9 = scalar_lea.sflag [#allocation3], 1
    %10 = vsyncpa %s9, 0
    loop: start=0, step=1, limit=4
    $region2: #{tpu_custom_call.1} parent=1 // loop_pre_header
      _
    $region3: #{tpu_custom_call.1} parent=1 // loop_header
      %s12 = sphi 0, %s16
      %p13 = scmp.ge.s32.totalorder %s12, 4
      %s19 = sphi 0, %s31
      %s20 = sphi 0, %s27
      %s21 = sphi 0, %s19
      %s22 = sphi 0, %s20
      %s23 = sphi 0, %s21
      %s24 = sphi 0, %s22
      %s32 = sphi 0, %s32
      %s34 = sphi 0, %s32
      %s35 = sphi 0, %s34
      %s49 = sphi 0, %s35
      %s53 = sphi 0, %s53
      %s55 = sphi 0, %s53
      %s56 = sphi 0, %s55
      %s70 = sphi 0, %s56
      %s78 = sphi 0, %s80
      %s81 = sphi 0, %s78
      %s82 = sphi 0, %s81
      %s98 = sphi 0, %s82
      %s106 = sphi 0, %s108
      %s109 = sphi 0, %s106
      %s110 = sphi 0, %s109
      %s126 = sphi 0, %s110
    $region4: #{tpu_custom_call.1} parent=1 // loop_header_branch
      %15 = sbr.rel (%p13) target = $region8
    $region5: #{tpu_custom_call.1} parent=1 // loop_body
      %s17 = ssub.s32 %s12, 1
      %s18 = ssub.s32 %s12, 2
      %s25 = sadd.s32 1, %s20
      %p26 = scmp.ge.s32.totalorder %s25, 1
      %s27 = scalar_select %p26, 0, %s25
      %s28 = sadd.s32 1, %s19
      %s29 = scalar_select %p26, %s28, %s19
      %p30 = scmp.ge.s32.totalorder %s29, 2
      %s31 = scalar_select %p30, 0, %s29
      %s33 = sadd.s32 %s32, 1
      %p36 = scmp.eq.s32.totalorder %s12, 1
      %p37 = scmp.ne.s32.totalorder %s32, %s34
      %p38 = scmp.eq.s32.totalorder %s12, 0
      %p39 = por %p37, %p38
      %p40 = scmp.ne.s32.totalorder %s32, %s34
      %p41 = scmp.eq.s32.totalorder %s17, 1
      %p42 = por %p40, %p41
      %p43 = scmp.ne.s32.totalorder %s34, %s35
      %p44 = scmp.eq.s32.totalorder %s17, 0
      %p45 = por %p43, %p44
      %p46 = scmp.ne.s32.totalorder %s34, %s35
      %p47 = scmp.eq.s32.totalorder %s18, 1
      %p48 = por %p46, %p47
      %p50 = scmp.ne.s32.totalorder %s35, %s49
      %p51 = scmp.eq.s32.totalorder %s18, 0
      %p52 = por %p50, %p51
      %s54 = sadd.s32 %s53, 1
      %p57 = scmp.eq.s32.totalorder %s12, 1
      %p58 = scmp.ne.s32.totalorder %s53, %s55
      %p59 = scmp.eq.s32.totalorder %s12, 0
      %p60 = por %p58, %p59
      %p61 = scmp.ne.s32.totalorder %s53, %s55
      %p62 = scmp.eq.s32.totalorder %s17, 1
      %p63 = por %p61, %p62
      %p64 = scmp.ne.s32.totalorder %s55, %s56
      %p65 = scmp.eq.s32.totalorder %s17, 0
      %p66 = por %p64, %p65
      %p67 = scmp.ne.s32.totalorder %s55, %s56
      %p68 = scmp.eq.s32.totalorder %s18, 1
      %p69 = por %p67, %p68
      %p71 = scmp.ne.s32.totalorder %s56, %s70
      %p72 = scmp.eq.s32.totalorder %s18, 0
      %p73 = por %p71, %p72
      %s74 = ssub.s32 %s19, %s31
      %s75 = ssub.s32 %s20, %s27
      %s76 = sor.u32 %s74, %s75
      %p77 = scmp.eq.s32.totalorder %s76, 0
      %s79 = sadd.s32 %s78, 1
      %s80 = scalar_select %p77, %s78, %s79
      %p83 = pneg %p77
      %p84 = scmp.eq.s32.totalorder %s12, 1
      %p85 = por %p83, %p84
      %p86 = scmp.ne.s32.totalorder %s78, %s81
      %p87 = scmp.eq.s32.totalorder %s12, 0
      %p88 = por %p86, %p87
      %p89 = scmp.ne.s32.totalorder %s78, %s81
      %p90 = scmp.eq.s32.totalorder %s17, 1
      %p91 = por %p89, %p90
      %p92 = scmp.ne.s32.totalorder %s81, %s82
      %p93 = scmp.eq.s32.totalorder %s17, 0
      %p94 = por %p92, %p93
      %p95 = scmp.ne.s32.totalorder %s81, %s82
      %p96 = scmp.eq.s32.totalorder %s18, 1
      %p97 = por %p95, %p96
      %p99 = scmp.ne.s32.totalorder %s82, %s98
      %p100 = scmp.eq.s32.totalorder %s18, 0
      %p101 = por %p99, %p100
      %s102 = ssub.s32 %s19, %s31
      %s103 = ssub.s32 %s20, %s27
      %s104 = sor.u32 %s102, %s103
      %p105 = scmp.eq.s32.totalorder %s104, 0
      %s107 = sadd.s32 %s106, 1
      %s108 = scalar_select %p105, %s106, %s107
      %p111 = pneg %p105
      %p112 = scmp.eq.s32.totalorder %s12, 1
      %p113 = por %p111, %p112
      %p114 = scmp.ne.s32.totalorder %s106, %s109
      %p115 = scmp.eq.s32.totalorder %s12, 0
      %p116 = por %p114, %p115
      %p117 = scmp.ne.s32.totalorder %s106, %s109
      %p118 = scmp.eq.s32.totalorder %s17, 1
      %p119 = por %p117, %p118
      %p120 = scmp.ne.s32.totalorder %s109, %s110
      %p121 = scmp.eq.s32.totalorder %s17, 0
      %p122 = por %p120, %p121
      %p123 = scmp.ne.s32.totalorder %s109, %s110
      %p124 = scmp.eq.s32.totalorder %s18, 1
      %p125 = por %p123, %p124
      %p127 = scmp.ne.s32.totalorder %s110, %s126
      %p128 = scmp.eq.s32.totalorder %s18, 0
      %p129 = por %p127, %p128
      %p130 = scmp.le.s32.totalorder 1, %s12
      %p131 = scmp.lt.s32.totalorder %s12, 3
      %p132 = pnand %p130, %p131
      %p133 = pneg %p132
      // Predicated region
      $region9: #{tpu_custom_call.1} parent=5 // pred_check
        _
      $region10: #{tpu_custom_call.1} parent=5 // pred_check_branch
        %135 = sbr.rel (%p132) target = $region12
      $region11: #{tpu_custom_call.1} parent=5 // pred_region
        %s136 = ssub.s32 %s12, 1
        // Predicated region
        $region13: #{tpu_custom_call.1} parent=11 // pred_check
          %p137 = pneg %p45
        $region14: #{tpu_custom_call.1} parent=11 // pred_check_branch
          %139 = sbr.rel (%p137) target = $region16
        $region15: #{tpu_custom_call.1} parent=11 // pred_region
          _
        $region16: #{tpu_custom_call.1} parent=11 // pred_fallthru
          _
        // Predicated region
        $region17: #{tpu_custom_call.1} parent=11 // pred_check
          %p140 = pneg %p66
        $region18: #{tpu_custom_call.1} parent=11 // pred_check_branch
          %142 = sbr.rel (%p140) target = $region20
        $region19: #{tpu_custom_call.1} parent=11 // pred_region
          _
        $region20: #{tpu_custom_call.1} parent=11 // pred_fallthru
          _
      $region12: #{tpu_custom_call.1} parent=5 // pred_fallthru
        _
      %p143 = scmp.lt.s32.totalorder %s12, 2
      // Predicated region
      $region21: #{tpu_custom_call.1} parent=5 // pred_check
        %p144 = pneg %p143
      $region22: #{tpu_custom_call.1} parent=5 // pred_check_branch
        %146 = sbr.rel (%p144) target = $region24
      $region23: #{tpu_custom_call.1} parent=5 // pred_region
        // Predicated region
        $region25: #{tpu_custom_call.1} parent=23 // pred_check
          %p147 = pneg %p88
        $region26: #{tpu_custom_call.1} parent=23 // pred_check_branch
          %149 = sbr.rel (%p147) target = $region28
        $region27: #{tpu_custom_call.1} parent=23 // pred_region
          %s150 = smul.u32 2, %s20
          %p151 = scmp.lt.s32.totalorder %s19, 1
          %s152 = scalar_select %p151, %s19, 1
          %p153 = scmp.lt.s32.totalorder %s150, 1
          %s154 = scalar_select %p153, %s150, 1
          %s155 = smul.addr %s152, 2
          %s156 = sadd.s32 %s154, %s155
          %s157 = smul.addr %s156, 4
          %s158 = scalar_lea.vmem %s2, %s157
          %s159 = smul.u32 2, %s20
        $region28: #{tpu_custom_call.1} parent=23 // pred_fallthru
          _
      $region24: #{tpu_custom_call.1} parent=5 // pred_fallthru
        _
      %p160 = scmp.le.s32.totalorder 1, %s12
      %p161 = scmp.lt.s32.totalorder %s12, 3
      %p162 = pnand %p160, %p161
      %p163 = pneg %p162
      // Predicated region
      $region29: #{tpu_custom_call.1} parent=5 // pred_check
        _
      $region30: #{tpu_custom_call.1} parent=5 // pred_check_branch
        %165 = sbr.rel (%p162) target = $region32
      $region31: #{tpu_custom_call.1} parent=5 // pred_region
        %s166 = ssub.s32 %s12, 1
        %p167 = pneg %p45
        %p168 = pneg %p42
        %p169 = pneg %p66
        %p170 = pneg %p63
        %s171 = smul.u32 2, %s22
        %p172 = scmp.lt.s32.totalorder %s21, 1
        %s173 = scalar_select %p172, %s21, 1
        %p174 = scmp.lt.s32.totalorder %s171, 1
        %s175 = scalar_select %p174, %s171, 1
        %s176 = smul.addr %s173, 2
        %s177 = sadd.s32 %s175, %s176
        %s178 = smul.addr %s177, 4
        %s179 = scalar_lea.vmem %s2, %s178
        %p180 = pneg %p94
        %p181 = pneg %p91
        %p182 = pneg %p122
        %p183 = pneg %p119
        %s184 = sand.u32 %s109, 1
        %s185 = scalar_lea.sflag [#allocation3], %s184
        %s186 = sand.u32 %s109, 1
        %s187 = smul.addr %s186, 16
        %s188 = scalar_lea.vmem [#allocation2], %s187
        %s189 = smul.u32 2, %s22
        %p190 = scmp.lt.s32.totalorder %s21, 1
        %s191 = scalar_select %p190, %s21, 1
        %p192 = scmp.lt.s32.totalorder %s189, 1
        %s193 = scalar_select %p192, %s189, 1
        %s194 = smul.addr %s191, 2
        %s195 = sadd.s32 %s193, %s194
        %s196 = smul.addr %s195, 4
        %s197 = scalar_lea.vmem %s2, %s196
        %s198 = smul.u32 2, %s22
        %s199 = smul.u32 2, %s22
        %v200 = vld [vmem:[%s0] sm:$0xff]
        %v201 = vld [vmem:[%s197] sm:$0xff]
        %v202 = vld [vmem:[%s1] sm:$0xff]
        %204 = vset.pattern.permute.xlu0 0
        %205 = vperm.xlu0 %204, %v202
        %v206 = vpop.permute.xlu0 %205
        %v209 = vcombine.high %v201, %v201
        %vm210 = vcmask 31744
        %v212 = vsel %vm210, %v200, 0
        %vm214 = vcmask 1043456
        %v215 = vsel %vm214, %v201, 0
        %v217 = vsel %vm214, %v209, 0
        %v219 = vand.u32 %v217, 4294901760
        %220 = vmatprep.subr.mxu0 %v219
        %v221 = vand.u32 %v215, 4294901760
        %222 = vmatpush1.msra.mxu0 %v221
        %223 = vmatprep.subr.mxu0 0.0
        %224 = vmatpush1.msra.mxu0 0.0
        %225 = vmatprep.subr.mxu0 0.0
        %226 = vmatpush1.msra.mxu0 0.0
        %227 = vmatprep.subr.mxu0 0.0
        %228 = vmatpush1.msra.mxu0 0.0
        %229 = vmatprep.subr.mxu0 0.0
        %230 = vmatpush1.msra.mxu0 0.0
        %231 = vmatprep.subr.mxu0 0.0
        %232 = vmatpush1.msra.mxu0 0.0
        %233 = vmatprep.subr.mxu0 0.0
        %234 = vmatpush1.msra.mxu0 0.0
        %235 = vmatprep.subr.mxu0 0.0
        %236 = vmatpush1.msra.mxu0 0.0
        %237 = vmatprep.subr.mxu0 0.0
        %238 = vmatpush1.msra.mxu0 0.0
        %239 = vmatprep.subr.mxu0 0.0
        %240 = vmatpush1.msra.mxu0 0.0
        %241 = vmatprep.subr.mxu0 0.0
        %242 = vmatpush1.msra.mxu0 0.0
        %243 = vmatprep.subr.mxu0 0.0
        %244 = vmatpush1.msra.mxu0 0.0
        %245 = vmatprep.subr.mxu0 0.0
        %246 = vmatpush1.msra.mxu0 0.0
        %247 = vmatprep.subr.mxu0 0.0
        %248 = vmatpush1.msra.mxu0 0.0
        %249 = vmatprep.subr.mxu0 0.0
        %250 = vmatpush1.msra.mxu0 0.0
        %251 = vmatprep.subr.mxu0 0.0
        %252 = vmatpush1.msra.mxu0 0.0
        %253 = vmatprep.subr.mxu0 0.0
        %254 = vmatpush1.msra.mxu0 0.0
        %255 = vmatprep.subr.mxu0 0.0
        %256 = vmatpush1.msra.mxu0 0.0
        %257 = vmatprep.subr.mxu0 0.0
        %258 = vmatpush1.msra.mxu0 0.0
        %259 = vmatprep.subr.mxu0 0.0
        %260 = vmatpush1.msra.mxu0 0.0
        %261 = vmatprep.subr.mxu0 0.0
        %262 = vmatpush1.msra.mxu0 0.0
        %263 = vmatprep.subr.mxu0 0.0
        %264 = vmatpush1.msra.mxu0 0.0
        %265 = vmatprep.subr.mxu0 0.0
        %266 = vmatpush1.msra.mxu0 0.0
        %267 = vmatprep.subr.mxu0 0.0
        %268 = vmatpush1.msra.mxu0 0.0
        %269 = vmatprep.subr.mxu0 0.0
        %270 = vmatpush1.msra.mxu0 0.0
        %271 = vmatprep.subr.mxu0 0.0
        %272 = vmatpush1.msra.mxu0 0.0
        %273 = vmatprep.subr.mxu0 0.0
        %274 = vmatpush1.msra.mxu0 0.0
        %275 = vmatprep.subr.mxu0 0.0
        %276 = vmatpush1.msra.mxu0 0.0
        %277 = vmatprep.subr.mxu0 0.0
        %278 = vmatpush1.msra.mxu0 0.0
        %279 = vmatprep.subr.mxu0 0.0
        %280 = vmatpush1.msra.mxu0 0.0
        %281 = vmatprep.subr.mxu0 0.0
        %282 = vmatpush1.msra.mxu0 0.0
        %283 = vmatprep.subr.mxu0 0.0
        %284 = vmatpush1.msra.mxu0 0.0
        %285 = vmatprep.mubr.f32.mxu0 0.0
        %v286 = vand.u32 %v212, 4294901760
        %v287 = vsub.f32 %v212, %v286
        %v288 = vand.u32 %v287, 4294901760
        %v289 = vsub.f32 %v287, %v288
        %v290 = vand.u32 %v289, 4294901760
        %291 = vmatmul.mubr.f32.gmra.mrb[0].mxu0 %v290
        %v292 = vpop.f32.mrb[0].mxu0
        %v293 = vadd.f32 %v206, %v292
        %v294 = vpop.f32.mrb[0].mxu0
        %v295 = vadd.f32 %v206, %v294
        %296 = vdwg.mxu0
        %v297 = vand.u32 %v217, 4294901760
        %v298 = vsub.f32 %v217, %v297
        %v299 = vand.u32 %v298, 4294901760
        %v300 = vsub.f32 %v298, %v299
        %v301 = vand.u32 %v300, 4294901760
        %302 = vmatprep.subr.mxu0 %v301
        %v303 = vand.u32 %v215, 4294901760
        %v304 = vsub.f32 %v215, %v303
        %v305 = vand.u32 %v304, 4294901760
        %v306 = vsub.f32 %v304, %v305
        %v307 = vand.u32 %v306, 4294901760
        %308 = vmatpush1.msra.mxu0 %v307
        %309 = vmatprep.subr.mxu0 0.0
        %310 = vmatpush1.msra.mxu0 0.0
        %311 = vmatprep.subr.mxu0 0.0
        %312 = vmatpush1.msra.mxu0 0.0
        %313 = vmatprep.subr.mxu0 0.0
        %314 = vmatpush1.msra.mxu0 0.0
        %315 = vmatprep.subr.mxu0 0.0
        %316 = vmatpush1.msra.mxu0 0.0
        %317 = vmatprep.subr.mxu0 0.0
        %318 = vmatpush1.msra.mxu0 0.0
        %319 = vmatprep.subr.mxu0 0.0
        %320 = vmatpush1.msra.mxu0 0.0
        %321 = vmatprep.subr.mxu0 0.0
        %322 = vmatpush1.msra.mxu0 0.0
        %323 = vmatprep.subr.mxu0 0.0
        %324 = vmatpush1.msra.mxu0 0.0
        %325 = vmatprep.subr.mxu0 0.0
        %326 = vmatpush1.msra.mxu0 0.0
        %327 = vmatprep.subr.mxu0 0.0
        %328 = vmatpush1.msra.mxu0 0.0
        %329 = vmatprep.subr.mxu0 0.0
        %330 = vmatpush1.msra.mxu0 0.0
        %331 = vmatprep.subr.mxu0 0.0
        %332 = vmatpush1.msra.mxu0 0.0
        %333 = vmatprep.subr.mxu0 0.0
        %334 = vmatpush1.msra.mxu0 0.0
        %335 = vmatprep.subr.mxu0 0.0
        %336 = vmatpush1.msra.mxu0 0.0
        %337 = vmatprep.subr.mxu0 0.0
        %338 = vmatpush1.msra.mxu0 0.0
        %339 = vmatprep.subr.mxu0 0.0
        %340 = vmatpush1.msra.mxu0 0.0
        %341 = vmatprep.subr.mxu0 0.0
        %342 = vmatpush1.msra.mxu0 0.0
        %343 = vmatprep.subr.mxu0 0.0
        %344 = vmatpush1.msra.mxu0 0.0
        %345 = vmatprep.subr.mxu0 0.0
        %346 = vmatpush1.msra.mxu0 0.0
        %347 = vmatprep.subr.mxu0 0.0
        %348 = vmatpush1.msra.mxu0 0.0
        %349 = vmatprep.subr.mxu0 0.0
        %350 = vmatpush1.msra.mxu0 0.0
        %351 = vmatprep.subr.mxu0 0.0
        %352 = vmatpush1.msra.mxu0 0.0
        %353 = vmatprep.subr.mxu0 0.0
        %354 = vmatpush1.msra.mxu0 0.0
        %355 = vmatprep.subr.mxu0 0.0
        %356 = vmatpush1.msra.mxu0 0.0
        %357 = vmatprep.subr.mxu0 0.0
        %358 = vmatpush1.msra.mxu0 0.0
        %359 = vmatprep.subr.mxu0 0.0
        %360 = vmatpush1.msra.mxu0 0.0
        %361 = vmatprep.subr.mxu0 0.0
        %362 = vmatpush1.msra.mxu0 0.0
        %363 = vmatprep.subr.mxu0 0.0
        %364 = vmatpush1.msra.mxu0 0.0
        %365 = vmatprep.subr.mxu0 0.0
        %366 = vmatpush1.msra.mxu0 0.0
        %367 = vmatprep.subr.mxu0 0.0
        %368 = vmatpush1.msra.mxu0 0.0
        %369 = vmatprep.subr.mxu0 0.0
        %370 = vmatpush1.msra.mxu0 0.0
        %371 = vmatprep.mubr.f32.mxu0 0.0
        %v372 = vand.u32 %v212, 4294901760
        %373 = vmatmul.mubr.f32.gmra.mrb[0].mxu0 %v372
        %v374 = vpop.f32.mrb[0].mxu0
        %v375 = vadd.f32 %v293, %v374
        %v376 = vpop.f32.mrb[0].mxu0
        %v377 = vadd.f32 %v295, %v376
        %378 = vdwg.mxu0
        %v379 = vand.u32 %v217, 4294901760
        %v380 = vsub.f32 %v217, %v379
        %381 = vmatprep.subr.mxu0 %v380
        %v382 = vand.u32 %v215, 4294901760
        %v383 = vsub.f32 %v215, %v382
        %384 = vmatpush1.msra.mxu0 %v383
        %385 = vmatprep.subr.mxu0 0.0
        %386 = vmatpush1.msra.mxu0 0.0
        %387 = vmatprep.subr.mxu0 0.0
        %388 = vmatpush1.msra.mxu0 0.0
        %389 = vmatprep.subr.mxu0 0.0
        %390 = vmatpush1.msra.mxu0 0.0
        %391 = vmatprep.subr.mxu0 0.0
        %392 = vmatpush1.msra.mxu0 0.0
        %393 = vmatprep.subr.mxu0 0.0
        %394 = vmatpush1.msra.mxu0 0.0
        %395 = vmatprep.subr.mxu0 0.0
        %396 = vmatpush1.msra.mxu0 0.0
        %397 = vmatprep.subr.mxu0 0.0
        %398 = vmatpush1.msra.mxu0 0.0
        %399 = vmatprep.subr.mxu0 0.0
        %400 = vmatpush1.msra.mxu0 0.0
        %401 = vmatprep.subr.mxu0 0.0
        %402 = vmatpush1.msra.mxu0 0.0
        %403 = vmatprep.subr.mxu0 0.0
        %404 = vmatpush1.msra.mxu0 0.0
        %405 = vmatprep.subr.mxu0 0.0
        %406 = vmatpush1.msra.mxu0 0.0
        %407 = vmatprep.subr.mxu0 0.0
        %408 = vmatpush1.msra.mxu0 0.0
        %409 = vmatprep.subr.mxu0 0.0
        %410 = vmatpush1.msra.mxu0 0.0
        %411 = vmatprep.subr.mxu0 0.0
        %412 = vmatpush1.msra.mxu0 0.0
        %413 = vmatprep.subr.mxu0 0.0
        %414 = vmatpush1.msra.mxu0 0.0
        %415 = vmatprep.subr.mxu0 0.0
        %416 = vmatpush1.msra.mxu0 0.0
        %417 = vmatprep.subr.mxu0 0.0
        %418 = vmatpush1.msra.mxu0 0.0
        %419 = vmatprep.subr.mxu0 0.0
        %420 = vmatpush1.msra.mxu0 0.0
        %421 = vmatprep.subr.mxu0 0.0
        %422 = vmatpush1.msra.mxu0 0.0
        %423 = vmatprep.subr.mxu0 0.0
        %424 = vmatpush1.msra.mxu0 0.0
        %425 = vmatprep.subr.mxu0 0.0
        %426 = vmatpush1.msra.mxu0 0.0
        %427 = vmatprep.subr.mxu0 0.0
        %428 = vmatpush1.msra.mxu0 0.0
        %429 = vmatprep.subr.mxu0 0.0
        %430 = vmatpush1.msra.mxu0 0.0
        %431 = vmatprep.subr.mxu0 0.0
        %432 = vmatpush1.msra.mxu0 0.0
        %433 = vmatprep.subr.mxu0 0.0
        %434 = vmatpush1.msra.mxu0 0.0
        %435 = vmatprep.subr.mxu0 0.0
        %436 = vmatpush1.msra.mxu0 0.0
        %437 = vmatprep.subr.mxu0 0.0
        %438 = vmatpush1.msra.mxu0 0.0
        %439 = vmatprep.subr.mxu0 0.0
        %440 = vmatpush1.msra.mxu0 0.0
        %441 = vmatprep.subr.mxu0 0.0
        %442 = vmatpush1.msra.mxu0 0.0
        %443 = vmatprep.subr.mxu0 0.0
        %444 = vmatpush1.msra.mxu0 0.0
        %445 = vmatprep.subr.mxu0 0.0
        %446 = vmatpush1.msra.mxu0 0.0
        %447 = vmatprep.mubr.f32.mxu0 0.0
        %v448 = vand.u32 %v212, 4294901760
        %v449 = vsub.f32 %v212, %v448
        %450 = vmatmul.mubr.f32.gmra.mrb[0].mxu0 %v449
        %v451 = vpop.f32.mrb[0].mxu0
        %v452 = vadd.f32 %v375, %v451
        %v453 = vpop.f32.mrb[0].mxu0
        %v454 = vadd.f32 %v377, %v453
        %455 = vdwg.mxu0
        %v456 = vand.u32 %v217, 4294901760
        %457 = vmatprep.subr.mxu0 %v456
        %v458 = vand.u32 %v215, 4294901760
        %459 = vmatpush1.msra.mxu0 %v458
        %460 = vmatprep.subr.mxu0 0.0
        %461 = vmatpush1.msra.mxu0 0.0
        %462 = vmatprep.subr.mxu0 0.0
        %463 = vmatpush1.msra.mxu0 0.0
        %464 = vmatprep.subr.mxu0 0.0
        %465 = vmatpush1.msra.mxu0 0.0
        %466 = vmatprep.subr.mxu0 0.0
        %467 = vmatpush1.msra.mxu0 0.0
        %468 = vmatprep.subr.mxu0 0.0
        %469 = vmatpush1.msra.mxu0 0.0
        %470 = vmatprep.subr.mxu0 0.0
        %471 = vmatpush1.msra.mxu0 0.0
        %472 = vmatprep.subr.mxu0 0.0
        %473 = vmatpush1.msra.mxu0 0.0
        %474 = vmatprep.subr.mxu0 0.0
        %475 = vmatpush1.msra.mxu0 0.0
        %476 = vmatprep.subr.mxu0 0.0
        %477 = vmatpush1.msra.mxu0 0.0
        %478 = vmatprep.subr.mxu0 0.0
        %479 = vmatpush1.msra.mxu0 0.0
        %480 = vmatprep.subr.mxu0 0.0
        %481 = vmatpush1.msra.mxu0 0.0
        %482 = vmatprep.subr.mxu0 0.0
        %483 = vmatpush1.msra.mxu0 0.0
        %484 = vmatprep.subr.mxu0 0.0
        %485 = vmatpush1.msra.mxu0 0.0
        %486 = vmatprep.subr.mxu0 0.0
        %487 = vmatpush1.msra.mxu0 0.0
        %488 = vmatprep.subr.mxu0 0.0
        %489 = vmatpush1.msra.mxu0 0.0
        %490 = vmatprep.subr.mxu0 0.0
        %491 = vmatpush1.msra.mxu0 0.0
        %492 = vmatprep.subr.mxu0 0.0
        %493 = vmatpush1.msra.mxu0 0.0
        %494 = vmatprep.subr.mxu0 0.0
        %495 = vmatpush1.msra.mxu0 0.0
        %496 = vmatprep.subr.mxu0 0.0
        %497 = vmatpush1.msra.mxu0 0.0
        %498 = vmatprep.subr.mxu0 0.0
        %499 = vmatpush1.msra.mxu0 0.0
        %500 = vmatprep.subr.mxu0 0.0
        %501 = vmatpush1.msra.mxu0 0.0
        %502 = vmatprep.subr.mxu0 0.0
        %503 = vmatpush1.msra.mxu0 0.0
        %504 = vmatprep.subr.mxu0 0.0
        %505 = vmatpush1.msra.mxu0 0.0
        %506 = vmatprep.subr.mxu0 0.0
        %507 = vmatpush1.msra.mxu0 0.0
        %508 = vmatprep.subr.mxu0 0.0
        %509 = vmatpush1.msra.mxu0 0.0
        %510 = vmatprep.subr.mxu0 0.0
        %511 = vmatpush1.msra.mxu0 0.0
        %512 = vmatprep.subr.mxu0 0.0
        %513 = vmatpush1.msra.mxu0 0.0
        %514 = vmatprep.subr.mxu0 0.0
        %515 = vmatpush1.msra.mxu0 0.0
        %516 = vmatprep.subr.mxu0 0.0
        %517 = vmatpush1.msra.mxu0 0.0
        %518 = vmatprep.subr.mxu0 0.0
        %519 = vmatpush1.msra.mxu0 0.0
        %520 = vmatprep.subr.mxu0 0.0
        %521 = vmatpush1.msra.mxu0 0.0
        %522 = vmatprep.mubr.f32.mxu0 0.0
        %v523 = vand.u32 %v212, 4294901760
        %v524 = vsub.f32 %v212, %v523
        %v525 = vand.u32 %v524, 4294901760
        %526 = vmatmul.mubr.f32.gmra.mrb[0].mxu0 %v525
        %v527 = vpop.f32.mrb[0].mxu0
        %v528 = vadd.f32 %v452, %v527
        %v529 = vpop.f32.mrb[0].mxu0
        %v530 = vadd.f32 %v454, %v529
        %531 = vdwg.mxu0
        %v532 = vand.u32 %v217, 4294901760
        %v533 = vsub.f32 %v217, %v532
        %v534 = vand.u32 %v533, 4294901760
        %535 = vmatprep.subr.mxu0 %v534
        %v536 = vand.u32 %v215, 4294901760
        %v537 = vsub.f32 %v215, %v536
        %v538 = vand.u32 %v537, 4294901760
        %539 = vmatpush1.msra.mxu0 %v538
        %540 = vmatprep.subr.mxu0 0.0
        %541 = vmatpush1.msra.mxu0 0.0
        %542 = vmatprep.subr.mxu0 0.0
        %543 = vmatpush1.msra.mxu0 0.0
        %544 = vmatprep.subr.mxu0 0.0
        %545 = vmatpush1.msra.mxu0 0.0
        %546 = vmatprep.subr.mxu0 0.0
        %547 = vmatpush1.msra.mxu0 0.0
        %548 = vmatprep.subr.mxu0 0.0
        %549 = vmatpush1.msra.mxu0 0.0
        %550 = vmatprep.subr.mxu0 0.0
        %551 = vmatpush1.msra.mxu0 0.0
        %552 = vmatprep.subr.mxu0 0.0
        %553 = vmatpush1.msra.mxu0 0.0
        %554 = vmatprep.subr.mxu0 0.0
        %555 = vmatpush1.msra.mxu0 0.0
        %556 = vmatprep.subr.mxu0 0.0
        %557 = vmatpush1.msra.mxu0 0.0
        %558 = vmatprep.subr.mxu0 0.0
        %559 = vmatpush1.msra.mxu0 0.0
        %560 = vmatprep.subr.mxu0 0.0
        %561 = vmatpush1.msra.mxu0 0.0
        %562 = vmatprep.subr.mxu0 0.0
        %563 = vmatpush1.msra.mxu0 0.0
        %564 = vmatprep.subr.mxu0 0.0
        %565 = vmatpush1.msra.mxu0 0.0
        %566 = vmatprep.subr.mxu0 0.0
        %567 = vmatpush1.msra.mxu0 0.0
        %568 = vmatprep.subr.mxu0 0.0
        %569 = vmatpush1.msra.mxu0 0.0
        %570 = vmatprep.subr.mxu0 0.0
        %571 = vmatpush1.msra.mxu0 0.0
        %572 = vmatprep.subr.mxu0 0.0
        %573 = vmatpush1.msra.mxu0 0.0
        %574 = vmatprep.subr.mxu0 0.0
        %575 = vmatpush1.msra.mxu0 0.0
        %576 = vmatprep.subr.mxu0 0.0
        %577 = vmatpush1.msra.mxu0 0.0
        %578 = vmatprep.subr.mxu0 0.0
        %579 = vmatpush1.msra.mxu0 0.0
        %580 = vmatprep.subr.mxu0 0.0
        %581 = vmatpush1.msra.mxu0 0.0
        %582 = vmatprep.subr.mxu0 0.0
        %583 = vmatpush1.msra.mxu0 0.0
        %584 = vmatprep.subr.mxu0 0.0
        %585 = vmatpush1.msra.mxu0 0.0
        %586 = vmatprep.subr.mxu0 0.0
        %587 = vmatpush1.msra.mxu0 0.0
        %588 = vmatprep.subr.mxu0 0.0
        %589 = vmatpush1.msra.mxu0 0.0
        %590 = vmatprep.subr.mxu0 0.0
        %591 = vmatpush1.msra.mxu0 0.0
        %592 = vmatprep.subr.mxu0 0.0
        %593 = vmatpush1.msra.mxu0 0.0
        %594 = vmatprep.subr.mxu0 0.0
        %595 = vmatpush1.msra.mxu0 0.0
        %596 = vmatprep.subr.mxu0 0.0
        %597 = vmatpush1.msra.mxu0 0.0
        %598 = vmatprep.subr.mxu0 0.0
        %599 = vmatpush1.msra.mxu0 0.0
        %600 = vmatprep.subr.mxu0 0.0
        %601 = vmatpush1.msra.mxu0 0.0
        %602 = vmatprep.mubr.f32.mxu0 0.0
        %v603 = vand.u32 %v212, 4294901760
        %604 = vmatmul.mubr.f32.gmra.mrb[0].mxu0 %v603
        %v605 = vpop.f32.mrb[0].mxu0
        %v606 = vadd.f32 %v528, %v605
        %v607 = vpop.f32.mrb[0].mxu0
        %v608 = vadd.f32 %v530, %v607
        %609 = vdwg.mxu0
        %v610 = vand.u32 %v217, 4294901760
        %611 = vmatprep.subr.mxu0 %v610
        %v612 = vand.u32 %v215, 4294901760
        %613 = vmatpush1.msra.mxu0 %v612
        %614 = vmatprep.subr.mxu0 0.0
        %615 = vmatpush1.msra.mxu0 0.0
        %616 = vmatprep.subr.mxu0 0.0
        %617 = vmatpush1.msra.mxu0 0.0
        %618 = vmatprep.subr.mxu0 0.0
        %619 = vmatpush1.msra.mxu0 0.0
        %620 = vmatprep.subr.mxu0 0.0
        %621 = vmatpush1.msra.mxu0 0.0
        %622 = vmatprep.subr.mxu0 0.0
        %623 = vmatpush1.msra.mxu0 0.0
        %624 = vmatprep.subr.mxu0 0.0
        %625 = vmatpush1.msra.mxu0 0.0
        %626 = vmatprep.subr.mxu0 0.0
        %627 = vmatpush1.msra.mxu0 0.0
        %628 = vmatprep.subr.mxu0 0.0
        %629 = vmatpush1.msra.mxu0 0.0
        %630 = vmatprep.subr.mxu0 0.0
        %631 = vmatpush1.msra.mxu0 0.0
        %632 = vmatprep.subr.mxu0 0.0
        %633 = vmatpush1.msra.mxu0 0.0
        %634 = vmatprep.subr.mxu0 0.0
        %635 = vmatpush1.msra.mxu0 0.0
        %636 = vmatprep.subr.mxu0 0.0
        %637 = vmatpush1.msra.mxu0 0.0
        %638 = vmatprep.subr.mxu0 0.0
        %639 = vmatpush1.msra.mxu0 0.0
        %640 = vmatprep.subr.mxu0 0.0
        %641 = vmatpush1.msra.mxu0 0.0
        %642 = vmatprep.subr.mxu0 0.0
        %643 = vmatpush1.msra.mxu0 0.0
        %644 = vmatprep.subr.mxu0 0.0
        %645 = vmatpush1.msra.mxu0 0.0
        %646 = vmatprep.subr.mxu0 0.0
        %647 = vmatpush1.msra.mxu0 0.0
        %648 = vmatprep.subr.mxu0 0.0
        %649 = vmatpush1.msra.mxu0 0.0
        %650 = vmatprep.subr.mxu0 0.0
        %651 = vmatpush1.msra.mxu0 0.0
        %652 = vmatprep.subr.mxu0 0.0
        %653 = vmatpush1.msra.mxu0 0.0
        %654 = vmatprep.subr.mxu0 0.0
        %655 = vmatpush1.msra.mxu0 0.0
        %656 = vmatprep.subr.mxu0 0.0
        %657 = vmatpush1.msra.mxu0 0.0
        %658 = vmatprep.subr.mxu0 0.0
        %659 = vmatpush1.msra.mxu0 0.0
        %660 = vmatprep.subr.mxu0 0.0
        %661 = vmatpush1.msra.mxu0 0.0
        %662 = vmatprep.subr.mxu0 0.0
        %663 = vmatpush1.msra.mxu0 0.0
        %664 = vmatprep.subr.mxu0 0.0
        %665 = vmatpush1.msra.mxu0 0.0
        %666 = vmatprep.subr.mxu0 0.0
        %667 = vmatpush1.msra.mxu0 0.0
        %668 = vmatprep.subr.mxu0 0.0
        %669 = vmatpush1.msra.mxu0 0.0
        %670 = vmatprep.subr.mxu0 0.0
        %671 = vmatpush1.msra.mxu0 0.0
        %672 = vmatprep.subr.mxu0 0.0
        %673 = vmatpush1.msra.mxu0 0.0
        %674 = vmatprep.subr.mxu0 0.0
        %675 = vmatpush1.msra.mxu0 0.0
        %676 = vmatprep.mubr.f32.mxu0 0.0
        %v677 = vand.u32 %v212, 4294901760
        %678 = vmatmul.mubr.f32.gmra.mrb[0].mxu0 %v677
        %v679 = vpop.f32.mrb[0].mxu0
        %v680 = vadd.f32 %v606, %v679
        %v681 = vpop.f32.mrb[0].mxu0
        %v682 = vadd.f32 %v608, %v681
        %683 = vdwg.mxu0
        %684 = vst [vmem:[%s188] sm:$0xff] %v680
        %685 = vst [vmem:[%s188 + $0x8] sm:$0xff] %v682
        %s686 = sand.u32 %s109, 1
        %s687 = scalar_lea.sflag [#allocation3], %s686
        %s688 = sand.u32 %s109, 1
        %s689 = smul.addr %s688, 16
        %s690 = scalar_lea.vmem [#allocation2], %s689
        // Predicated region
        $region33: #{tpu_custom_call.1} parent=31 // pred_check
          %p691 = pneg %p119
        $region34: #{tpu_custom_call.1} parent=31 // pred_check_branch
          %693 = sbr.rel (%p691) target = $region36
        $region35: #{tpu_custom_call.1} parent=31 // pred_region
          %s694 = smul.u32 2, %s22
          %s696 = ssub.s32 256, 256
          %697 = vsyncadd %s687, %s696
          %s698 = smul.addr %s21, 2
          %s699 = sadd.s32 %s694, %s698
          %s700 = smul.addr %s699, 128
          %s701 = scalar_lea.hbm %s3, %s700
          %s703 = sshll.u32 %s690, 4
          %s704 = int_to_ptr.vmem [resolvable:$true] %s703
          %706 = dma.vmem_to_hbm [thread:$0]  %s704, 256, %s701, %s687
        $region36: #{tpu_custom_call.1} parent=31 // pred_fallthru
          _
      $region32: #{tpu_custom_call.1} parent=5 // pred_fallthru
        _
      %p707 = scmp.le.s32.totalorder 2, %s12
      // Predicated region
      $region37: #{tpu_custom_call.1} parent=5 // pred_check
        %p708 = pneg %p707
      $region38: #{tpu_custom_call.1} parent=5 // pred_check_branch
        %710 = sbr.rel (%p708) target = $region40
      $region39: #{tpu_custom_call.1} parent=5 // pred_region
        %s711 = ssub.s32 %s12, 2
        // Predicated region
        $region41: #{tpu_custom_call.1} parent=39 // pred_check
          %p712 = pneg %p125
        $region42: #{tpu_custom_call.1} parent=39 // pred_check_branch
          %714 = sbr.rel (%p712) target = $region44
        $region43: #{tpu_custom_call.1} parent=39 // pred_region
          %s715 = sand.u32 %s110, 1
          %s716 = scalar_lea.sflag [#allocation3], %s715
          %s717 = sand.u32 %s110, 1
          %s718 = smul.addr %s717, 16
          %s719 = scalar_lea.vmem [#allocation2], %s718
          %720 = dma.done %s716, 256
        $region44: #{tpu_custom_call.1} parent=39 // pred_fallthru
          _
      $region40: #{tpu_custom_call.1} parent=5 // pred_fallthru
        _
    $region6: #{tpu_custom_call.1} parent=1 // loop_footer
      %s16 = sadd.s32 1, %s12
    $region7: #{tpu_custom_call.1} parent=1 // loop_footer_branch
      %11 = sbr.rel target = $region3
    $region8: #{tpu_custom_call.1} parent=1 // loop_exit
      _
    %721 = vsyncpa [#allocation3], 1
    %s722 = scalar_lea.sflag [#allocation3], 1
    %723 = vsyncpa %s722, 1

</llo_original>
